<compile_context>
chip_gen: v7x
topology: tpu7x:2x2x1
jax: 0.10.0
libtpu: 0.0.40
codegen_flags: <defaults>
</compile_context>

<pallas_src>
import functools

import jax
import jax.numpy as jnp
from jax.experimental import pallas as pl
from jax.experimental.pallas import tpu as pltpu

hidden_dropout_prob = 0.1
hidden_dim = 32

_LANES = 128
# 8192-row tile: input pads to [8192,128] f32 = 4 MiB/buffer, output likewise
# 4 MiB/buffer -> ~16 MiB double-buffered. Big enough to hide per-step grid
# overhead on all generations, small enough for v7x's reduced VMEM.
_TILE_B = 8192

_KEEP_PROB = 1.0 - hidden_dropout_prob
# Signed 31-bit threshold (compare on hash >> 1): avoids relying on unsigned
# 32-bit compares in the vector unit. Granularity 2^-31 (negligible).
_KEEP_THRESHOLD_31 = min(int(_KEEP_PROB * (1 << 31)), (1 << 31) - 1)


def _keep_mask(rows_u32, cols_u32, seed_u32):
    """Stateless Bernoulli(keep_prob) mask from a murmur-style uint32 hash.

    Pure jnp bit ops (VPU only): lowers on Mosaic and in interpret mode, unlike
    pltpu.prng_*. Keyed on the *global* row index so the mask does not depend
    on tiling. Shared by the kernel and the host-side reference check.
    """
    h = (rows_u32 * jnp.uint32(0x9E3779B1)
         + cols_u32 * jnp.uint32(0x85EBCA77)
         + seed_u32 * jnp.uint32(0xC2B2AE3D))
    h = h ^ (h >> 16)
    h = h * jnp.uint32(0x7FEB352D)
    h = h ^ (h >> 15)
    h = h * jnp.uint32(0x846CA68B)
    h = h ^ (h >> 16)
    return (h >> 1).astype(jnp.int32) < jnp.int32(_KEEP_THRESHOLD_31)


def _head_kernel(seed_ref, x_ref, w_ref, b_ref, o_ref, *, train):
    tb = x_ref.shape[0]

    # Static in-VMEM feature slice. The unused tail x[:, H:F] is still DMA'd.
    # TODO(synk): to stop paying HBM bandwidth for x[:, hidden_dim:F], fuse
    # this head into the producer kernel or store x pre-sliced as [B, 32]; a
    # (tb, 32) BlockSpec violates the 128-lane rule and a manual sub-row DMA
    # has no interpret-mode lowering.
    h = x_ref[:, :hidden_dim].astype(jnp.float32)

    if train:
        # Inverted dropout with a stateless hash PRNG (see _keep_mask).
        base = pl.program_id(0).astype(jnp.uint32) * jnp.uint32(tb)
        rows = base + jax.lax.broadcasted_iota(
            jnp.int32, (tb, hidden_dim), 0).astype(jnp.uint32)
        cols = jax.lax.broadcasted_iota(
            jnp.int32, (tb, hidden_dim), 1).astype(jnp.uint32)
        keep = _keep_mask(rows, cols, seed_ref[0].astype(jnp.uint32))
        h = jnp.where(keep, h * jnp.float32(1.0 / _KEEP_PROB), 0.0)

    # Classifier [tb,32] x [32,2], deliberately OFF the MXU: a K=32/N=2
    # jnp.dot still issues ~tb/8 vmatmul pushes (~8-cycle result cadence each),
    # which would exceed the tile's HBM DMA on every generation. Instead:
    # 2 broadcast multiplies (VPU) + 2 32-lane reductions (XLU) + 1 lane concat.
    w = w_ref[...].astype(jnp.float32)                      # [2, 32]
    o0 = jnp.sum(h * w[0:1, :], axis=-1, keepdims=True)     # [tb, 1]
    o1 = jnp.sum(h * w[1:2, :], axis=-1, keepdims=True)     # [tb, 1]
    o = jnp.concatenate([o0, o1], axis=-1) + b_ref[...].astype(jnp.float32)
    o_ref[...] = o.astype(o_ref.dtype)


def head_forward(x, weight, bias, *, train=False, seed=0, core_parallel=False):
    """Head forward: dropout(x[:, :hidden_dim]) @ weight.T + bias.

    x: [B, F] with F >= hidden_dim; weight: [2, hidden_dim] (PyTorch layout);
    bias: [2]. Set core_parallel=True on v7x (2 TensorCores/chip) when the
    batch spans multiple tiles to split the grid across both cores.
    """
    B, F = x.shape
    assert F >= hidden_dim
    assert weight.shape == (2, hidden_dim)

    b2d = bias.reshape(1, 2)                            # 2-D for clean broadcast
    seed_arr = jnp.asarray([seed], dtype=jnp.int32)     # runtime scalar -> SMEM

    tb = B if B <= _TILE_B else _TILE_B                 # full dim or 8k tile
    grid = (pl.cdiv(B, tb),)

    # Explicit scoped-VMEM budget = padded, double-buffered footprint + slack.
    # (Input and output blocks both pad their last dim to 128 lanes.) This is
    # ~18 MiB at TB=8192/f32: above v5e's 16 MiB scoped default, well under
    # v7x's 32 MiB scoped / 64 MiB physical.
    itemsize = jnp.dtype(x.dtype).itemsize
    padded_f = ((F + _LANES - 1) // _LANES) * _LANES
    vmem_bytes = 2 * tb * (padded_f + _LANES) * itemsize + (2 << 20)
    vmem_bytes = max(int(vmem_bytes), 4 << 20)

    # Batch axis is embarrassingly parallel. CORE_PARALLEL (when requested)
    # splits it across v7x's two TensorCores; plain "parallel" is the safe
    # default on single-core v5e/v6e and tiny grids.
    dim_sem = ((getattr(pltpu, "CORE_PARALLEL", "parallel"),)
               if core_parallel else ("parallel",))

    kernel = functools.partial(_head_kernel, train=train)

    return pl.pallas_call(
        kernel,
        out_shape=jax.ShapeDtypeStruct((B, 2), x.dtype),
        grid_spec=pltpu.PrefetchScalarGridSpec(
            num_scalar_prefetch=1,                       # seed lands in SMEM
            grid=grid,
            in_specs=[
                pl.BlockSpec((tb, F), lambda i, s: (i, 0)),           # x tile
                pl.BlockSpec((2, hidden_dim), lambda i, s: (0, 0)),   # W (resident)
                pl.BlockSpec((1, 2), lambda i, s: (0, 0)),            # b (resident)
            ],
            out_specs=pl.BlockSpec((tb, 2), lambda i, s: (i, 0)),
        ),
        compiler_params=pltpu.CompilerParams(
            dimension_semantics=dim_sem,
            vmem_limit_bytes=vmem_bytes,
        ),
    )(seed_arr, x, weight, b2d)


if __name__ == "__main__":
    key = jax.random.PRNGKey(0)
    kx, kw, kb = jax.random.split(key, 3)

    B, F = 8, 48                                  # input has >= hidden_dim features
    x = jax.random.normal(kx, (B, F), dtype=jnp.float32)

    # Deterministic parameter init (shapes from nn.Linear(hidden_dim, 2)).
    bound = 1.0 / (hidden_dim ** 0.5)
    weight = jax.random.uniform(kw, (2, hidden_dim), jnp.float32, -bound, bound)
    bias = jax.random.uniform(kb, (2,), jnp.float32, -bound, bound)

    # Eval-mode forward (dropout is identity, matching module.eval()).
    out = head_forward(x, weight, bias, train=False)
    jax.block_until_ready(out)
    ref = x[:, :hidden_dim] @ weight.T + bias
    assert out.shape == (B, 2)
    assert jnp.allclose(out, ref, atol=1e-5, rtol=1e-5)

    # Train-mode forward. The dropout mask is a deterministic function of
    # (global row, feature, seed), so rebuild it host-side with the same hash
    # and check the fused kernel end-to-end.
    seed = 1234
    out_tr = head_forward(x, weight, bias, train=True, seed=seed)
    jax.block_until_ready(out_tr)
    rows = jnp.arange(B, dtype=jnp.uint32)[:, None]
    cols = jnp.arange(hidden_dim, dtype=jnp.uint32)[None, :]
    keep = _keep_mask(rows, cols, jnp.uint32(seed))
    h_ref = jnp.where(keep, x[:, :hidden_dim] / _KEEP_PROB, 0.0)
    ref_tr = h_ref @ weight.T + bias
    assert out_tr.shape == (B, 2)
    assert jnp.allclose(out_tr, ref_tr, atol=1e-5, rtol=1e-5)

    # TODO(synk): dropout uses a stateless hash PRNG, so it cannot bit-match
    # torch's RNG stream; the Bernoulli(keep) + 1/keep scaling semantics match
    # nn.Dropout exactly.
    print("KERNEL_OK")
</pallas_src>

<mosaic_0001>
module attributes {stable_mosaic.version = 11 : i64} {
  func.func @_head_kernel(%arg0: i32, %arg1: memref<1xi32, #tpu.memory_space<smem>>, %arg2: memref<8x48xf32, #tpu.memory_space<vmem>>, %arg3: memref<2x32xf32, #tpu.memory_space<vmem>>, %arg4: memref<1x2xf32, #tpu.memory_space<vmem>>, %arg5: memref<8x2xf32, #tpu.memory_space<vmem>>) attributes {dimension_semantics = [#tpu.dimension_semantics<parallel>], iteration_bounds = array<i64: 1>, scalar_prefetch = 1 : i64, scratch_operands = 0 : i64, tpu.core_type = #tpu.core_type<tc>, window_params = [{transform_indices = @transform_0, window_bounds = array<i64: 8, 48>}, {pipeline_mode = #tpu.pipeline_mode<synchronous>, transform_indices = @transform_1, window_bounds = array<i64: 2, 32>}, {pipeline_mode = #tpu.pipeline_mode<synchronous>, transform_indices = @transform_2, window_bounds = array<i64: 1, 2>}, {transform_indices = @transform_3, window_bounds = array<i64: 8, 2>}]} {
    %c0 = arith.constant 0 : index
    %c0_0 = arith.constant 0 : index
    %0 = vector.load %arg2[%c0, %c0_0] : memref<8x48xf32, #tpu.memory_space<vmem>>, vector<8x32xf32>
    %c0_1 = arith.constant 0 : index
    %c0_2 = arith.constant 0 : index
    %1 = vector.load %arg3[%c0_1, %c0_2] : memref<2x32xf32, #tpu.memory_space<vmem>>, vector<2x32xf32>
    %2 = vector.extract_strided_slice %1 {offsets = [0, 0], sizes = [1, 32], strides = [1, 1]} : vector<2x32xf32> to vector<1x32xf32>
    %3 = vector.broadcast %2 : vector<1x32xf32> to vector<8x32xf32>
    %4 = arith.mulf %0, %3 : vector<8x32xf32>
    %cst = arith.constant dense<0.000000e+00> : vector<8xf32>
    %5 = vector.multi_reduction <add>, %4, %cst [1] : vector<8x32xf32> to vector<8xf32>
    %6 = vector.shape_cast %5 : vector<8xf32> to vector<8x1xf32>
    %7 = vector.extract_strided_slice %1 {offsets = [1, 0], sizes = [1, 32], strides = [1, 1]} : vector<2x32xf32> to vector<1x32xf32>
    %8 = vector.broadcast %7 : vector<1x32xf32> to vector<8x32xf32>
    %9 = arith.mulf %0, %8 : vector<8x32xf32>
    %cst_3 = arith.constant dense<0.000000e+00> : vector<8xf32>
    %10 = vector.multi_reduction <add>, %9, %cst_3 [1] : vector<8x32xf32> to vector<8xf32>
    %11 = vector.shape_cast %10 : vector<8xf32> to vector<8x1xf32>
    %12 = tpu.concatenate %6, %11 in 1 : vector<8x1xf32>, vector<8x1xf32> -> vector<8x2xf32>
    %c0_4 = arith.constant 0 : index
    %c0_5 = arith.constant 0 : index
    %13 = vector.load %arg4[%c0_4, %c0_5] : memref<1x2xf32, #tpu.memory_space<vmem>>, vector<1x2xf32>
    %14 = vector.broadcast %13 : vector<1x2xf32> to vector<8x2xf32>
    %15 = arith.addf %12, %14 : vector<8x2xf32>
    %c0_6 = arith.constant 0 : index
    %c0_7 = arith.constant 0 : index
    %16 = vector.load %arg5[%c0_6, %c0_7] : memref<8x2xf32, #tpu.memory_space<vmem>>, vector<8x2xf32>
    tpu.vector_store %arg5[%c0_6, %c0_7], %15 {strides = array<i32>} : memref<8x2xf32, #tpu.memory_space<vmem>>, vector<8x2xf32>,
    return
  }
  func.func @transform_0(%arg0: i32, %arg1: memref<1xi32, #tpu.memory_space<smem>>) -> (i32, i32) {
    %c0_i32 = arith.constant 0 : i32
    %c0_i32_0 = arith.constant 0 : i32
    return %arg0, %c0_i32 : i32, i32
  }
  func.func @transform_1(%arg0: i32, %arg1: memref<1xi32, #tpu.memory_space<smem>>) -> (i32, i32) {
    %c0_i32 = arith.constant 0 : i32
    %c0_i32_0 = arith.constant 0 : i32
    %c0_i32_1 = arith.constant 0 : i32
    return %c0_i32, %c0_i32_0 : i32, i32
  }
  func.func @transform_2(%arg0: i32, %arg1: memref<1xi32, #tpu.memory_space<smem>>) -> (i32, i32) {
    %c0_i32 = arith.constant 0 : i32
    %c0_i32_0 = arith.constant 0 : i32
    %c0_i32_1 = arith.constant 0 : i32
    return %c0_i32, %c0_i32_0 : i32, i32
  }
  func.func @transform_3(%arg0: i32, %arg1: memref<1xi32, #tpu.memory_space<smem>>) -> (i32, i32) {
    %c0_i32 = arith.constant 0 : i32
    %c0_i32_0 = arith.constant 0 : i32
    return %arg0, %c0_i32 : i32, i32
  }
}

</mosaic_0001>

<llo_original>
// kernel: tpu_custom_call.1
$region0: #{tpu_custom_call.1}
  #allocation0 [shape = 'u32[]', space=smem, size = 0x4, offset = 0x4, fixed_abs, tag = 'smem constant byte address 0x4 - core index']
  #allocation1 [shape = 'u32[144,128]{1,0:T(1,128)}', space=vmem, size = 0x12000, scoped, tag = 'internal scratch']
  #allocation2 [shape = 's32[1]{0}', space=sflag, size = 0x4, scoped, tag = 'scoped memory for tpu_custom_call.1']
  #allocation3 [shape = 's32[1]{0:T(128)S(6)}', space=smem, size = 0x200, scoped, tag = 'prefetched SMEM operand 0']
  %s0 = inlined_call_operand.<no memory space> [shape: s32[1], index: 0, kind: input, shape index: {}]
  %s1 = inlined_call_operand.hbm [shape: f32[8,48], index: 1, kind: input, shape index: {}]
  %s2 = inlined_call_operand.vmem [shape: f32[2,32], index: 2, kind: input, shape index: {}]
  %s3 = inlined_call_operand.vmem [shape: f32[1,2], index: 3, kind: input, shape index: {}]
  %s4 = inlined_call_operand.vmem [shape: f32[8,2], index: 4, kind: output, shape index: {}]
  %s5 = sld [smem:[#allocation0]]
  $region26: #{tpu_custom_call.1} parent=0
    _
  %s7 = ssub.s32 1, %s5
  %s8 = scalar_select 0, %s7, %s5
  %9 = sst [smem:[#allocation3]] %s0
  $region1: #{tpu_custom_call.1} parent=0
    #allocation4 [shape = 'u8[4096]{0}', space=vmem, size = 0x1000, scoped, tag = 'input window, operand 1, single buffered']
    #allocation5 [shape = 's32[1]{0}', space=sflag, size = 0x4, scoped, tag = 'scoped memory for tpu_custom_call.1']
    %10 = vsyncpa [#allocation5], 0
    // Predicated region
    $region2: #{tpu_custom_call.1} parent=1 // pred_check
      _
    $region3: #{tpu_custom_call.1} parent=1 // pred_check_branch
      %12 = sbr.rel (0) target = $region5
    $region4: #{tpu_custom_call.1} parent=1 // pred_region
      %s14 = ssub.s32 128, 128
      %15 = vsyncadd [#allocation5], %s14
      %s17 = sshll.u32 [#allocation4], 4
      %s18 = int_to_ptr.vmem [resolvable:$true] %s17
      %20 = dma.hbm_to_vmem [thread:$0]  %s1, 128, %s18, [#allocation5]
    $region5: #{tpu_custom_call.1} parent=1 // pred_fallthru
      _
    // Predicated region
    $region6: #{tpu_custom_call.1} parent=1 // pred_check
      _
    $region7: #{tpu_custom_call.1} parent=1 // pred_check_branch
      %22 = sbr.rel (0) target = $region9
    $region8: #{tpu_custom_call.1} parent=1 // pred_region
      _
    $region9: #{tpu_custom_call.1} parent=1 // pred_fallthru
      _
    // Predicated region
    $region10: #{tpu_custom_call.1} parent=1 // pred_check
      _
    $region11: #{tpu_custom_call.1} parent=1 // pred_check_branch
      %24 = sbr.rel (0) target = $region13
    $region12: #{tpu_custom_call.1} parent=1 // pred_region
      _
    $region13: #{tpu_custom_call.1} parent=1 // pred_fallthru
      _
    // Predicated region
    $region14: #{tpu_custom_call.1} parent=1 // pred_check
      _
    $region15: #{tpu_custom_call.1} parent=1 // pred_check_branch
      %26 = sbr.rel (0) target = $region17
    $region16: #{tpu_custom_call.1} parent=1 // pred_region
      %27 = dma.done [#allocation5], 128
    $region17: #{tpu_custom_call.1} parent=1 // pred_fallthru
      _
    %v28 = vld [vmem:[#allocation4] sm:$0xff]
    %v29 = vld [vmem:[%s2] sm:$0x3]
    %v30 = vlaneseq
    %v31 = vshrl.u32 %v30, 7
    %v32 = vsub.s32 0, %v31
    %v33 = vrot.slane %v29, %v32
    %v34 = vmul.f32 %v28, %v33
    %vm35 = vcmask 261120
    %v36 = vsel %vm35, %v34, 0.0
    %37 = vadd.xlane.f32.xlu0 %v36
    %v38 = vpop.xlane.xlu0 %37
    %v39 = vlaneseq
    %v40 = vshrl.u32 %v39, 7
    %v41 = vsub.s32 1, %v40
    %v42 = vrot.slane %v29, %v41
    %v43 = vmul.f32 %v28, %v42
    %v44 = vsel %vm35, %v43, 0.0
    %45 = vadd.xlane.f32.xlu0 %v44
    %v46 = vpop.xlane.xlu0 %45
    %vm47 = vcmask 7168
    %v48 = vsel %vm47, %v38, %v46
    %v49 = vld [vmem:[%s3] sm:$0x1]
    %v51 = vlaneseq
    %v52 = vshrl.u32 %v51, 7
    %v53 = vsub.s32 0, %v52
    %v54 = vrot.slane %v49, %v53
    %v56 = vadd.f32 %v48, %v54
    %vm57 = vcmask 15360
    %58 = vst.msk [vmem:[%s4] sm:$0xff] %vm57, %v56
    // Predicated region
    $region18: #{tpu_custom_call.1} parent=1 // pred_check
      _
    $region19: #{tpu_custom_call.1} parent=1 // pred_check_branch
      %60 = sbr.rel (0) target = $region21
    $region20: #{tpu_custom_call.1} parent=1 // pred_region
      _
    $region21: #{tpu_custom_call.1} parent=1 // pred_fallthru
      _
    // Predicated region
    $region22: #{tpu_custom_call.1} parent=1 // pred_check
      _
    $region23: #{tpu_custom_call.1} parent=1 // pred_check_branch
      %62 = sbr.rel (0) target = $region25
    $region24: #{tpu_custom_call.1} parent=1 // pred_region
      _
    $region25: #{tpu_custom_call.1} parent=1 // pred_fallthru
      _
    %63 = vsyncpa [#allocation5], 1

</llo_original>
